<compile_context>
chip_gen: v6e
topology: v6e:2x2x1
jax: 0.10.0
libtpu: 0.0.40
codegen_flags: <defaults>
</compile_context>

<pallas_src>
import jax
import jax.numpy as jnp
from jax import lax
from jax.experimental import pallas as pl
from jax.experimental.pallas import tpu as pltpu

_CHUNK_ROWS = 8  # sublane-sized chunk: 3-layer chain live set stays ~20 vregs


def _make_ffnn_kernel(in_size, hidden, out_size, block_rows, block_lanes):
    """Unrolled VPU kernel for the (in -> hidden -> hidden -> out) MLP.

    SMEM parameter vector layout (float32, pre-scaled by 0.5 so that
    SIG(t) = sigmoid(t)*2-1 = tanh(t/2) becomes a plain tanh(w.x + b)):
      [ W1 row-major (hidden*in) | W2 (hidden*hidden) | W3 (out*hidden) | b1 b2 b3 ]
    """
    off_w2 = hidden * in_size
    off_w3 = off_w2 + hidden * hidden
    off_b = off_w3 + out_size * hidden
    n_chunks = block_rows // _CHUNK_ROWS
    assert block_rows % _CHUNK_ROWS == 0

    def kernel(params_ref, x_ref, o_ref):
        # params_ref: SMEM (off_b + 3,) via scalar prefetch
        # x_ref:      VMEM (in_size,  block_rows, block_lanes)
        # o_ref:      VMEM (out_size, block_rows, block_lanes)

        # Hoist all 48 grid-invariant scalars out of the chunk loop; the
        # multiplies below use vector-scalar operand forms (no per-chunk splat).
        w1 = [[params_ref[j * in_size + k] for k in range(in_size)]
              for j in range(hidden)]
        w2 = [[params_ref[off_w2 + j * hidden + k] for k in range(hidden)]
              for j in range(hidden)]
        w3 = [[params_ref[off_w3 + j * hidden + k] for k in range(hidden)]
              for j in range(out_size)]
        b1 = params_ref[off_b + 0]
        b2 = params_ref[off_b + 1]
        b3 = params_ref[off_b + 2]

        def dense_tanh(inputs, w_rows, bias):
            outs = []
            for row in w_rows:
                acc = row[0] * inputs[0]
                for w, v in zip(row[1:], inputs[1:]):
                    acc = acc + w * v
                # jnp.tanh lowers to the native EUP tanh (separate slot).
                outs.append(jnp.tanh(acc + bias))
            return outs

        def chunk_body(c, carry):
            r = pl.multiple_of(c * _CHUNK_ROWS, _CHUNK_ROWS)
            xs = [x_ref[i, pl.ds(r, _CHUNK_ROWS), :].astype(jnp.float32)
                  for i in range(in_size)]
            h = dense_tanh(xs, w1, b1)        # layer 1
            h = dense_tanh(h, w2, b2)         # layer 2
            ys = dense_tanh(h, w3, b3)        # layer 3
            for j in range(out_size):
                o_ref[j, pl.ds(r, _CHUNK_ROWS), :] = ys[j].astype(o_ref.dtype)
            return carry

        lax.fori_loop(0, n_chunks, chunk_body, 0, unroll=min(n_chunks, 8))

    return kernel


def _pick_block_rows(B, block_rows, block_lanes, sub):
    """Adapt block_rows: shrink for tiny batches, keep >=2 blocks when possible
    (v7x: feeds both TensorCores under dimension_semantics=('parallel',))."""
    def round_rows(r):
        return max(sub, ((r + sub - 1) // sub) * sub)

    rows_needed = pl.cdiv(B, block_lanes)
    if rows_needed <= block_rows:
        if rows_needed > 2 * sub:
            return round_rows(pl.cdiv(rows_needed, 2))   # split into 2 blocks
        return round_rows(rows_needed)                    # single shrunk block
    return block_rows


def ffnn_forward_feature_major(x_fm, w1, w2, w3, biases, *,
                               block_rows=512, block_lanes=256):
    """Feature-major forward (preferred: no wrapper-side transpose copies).

    x_fm: (input_size, B); w1: (5, input_size); w2: (5, 5); w3: (output_size, 5)
    (PyTorch Linear (out, in) layout); biases: (3,). Returns (output_size, B).

    Defaults move ~2 MiB of f32 HBM per grid step (1 MiB in + 1 MiB out),
    ~4 MiB double-buffered VMEM — comfortably under v5e/v6e/v7x budgets.
    bf16 x / bf16 y halves HBM bytes (compute stays f32 in-kernel).
    """
    in_size, B = x_fm.shape
    hidden = w1.shape[0]
    out_size = w3.shape[0]

    sub = 16 if jnp.dtype(x_fm.dtype).itemsize <= 2 else 8  # bf16 (16,128) packing
    assert block_rows % sub == 0 and block_lanes % 128 == 0

    block_rows = _pick_block_rows(B, block_rows, block_lanes, sub)
    block_batch = block_rows * block_lanes
    n_blocks = pl.cdiv(B, block_batch)
    Bp = n_blocks * block_batch
    n_rows = Bp // block_lanes

    xt = x_fm if Bp == B else jnp.pad(x_fm, ((0, 0), (0, Bp - B)))
    xt = xt.reshape(in_size, n_rows, block_lanes)

    # SIG(t) = tanh(t/2): fold the 0.5 into the tiny parameter vector.
    params = jnp.concatenate(
        [w1.reshape(-1), w2.reshape(-1), w3.reshape(-1), biases.reshape(-1)]
    ).astype(jnp.float32) * jnp.float32(0.5)

    kernel = _make_ffnn_kernel(in_size, hidden, out_size, block_rows, block_lanes)

    yt = pl.pallas_call(
        kernel,
        out_shape=jax.ShapeDtypeStruct((out_size, n_rows, block_lanes), x_fm.dtype),
        grid_spec=pltpu.PrefetchScalarGridSpec(
            num_scalar_prefetch=1,               # 48-entry param table -> SMEM once
            grid=(n_blocks,),
            in_specs=[pl.BlockSpec((in_size, block_rows, block_lanes),
                                   lambda i, p: (0, i, 0))],
            out_specs=pl.BlockSpec((out_size, block_rows, block_lanes),
                                   lambda i, p: (0, i, 0)),
        ),
        compiler_params=pltpu.CompilerParams(
            dimension_semantics=("parallel",),
        ),
    )(params, xt)

    return yt.reshape(out_size, Bp)[:, :B]


def ffnn_forward(x, w1, w2, w3, biases, **block_kw):
    """Batch-major convenience wrapper: x (B, input_size) -> (B, output_size).

    Note: the transpose here is an extra XLA HBM round trip; pipelines that can
    stay feature-major should call ffnn_forward_feature_major directly.
    """
    y_fm = ffnn_forward_feature_major(jnp.transpose(x), w1, w2, w3, biases,
                                      **block_kw)
    return jnp.transpose(y_fm)


def ffnn_reference(x, w1, w2, w3, biases):
    """Pure-JAX reference mirroring the PyTorch train_step forward."""
    sig = lambda t: jax.nn.sigmoid(t) * 2.0 - 1.0
    h1 = sig(x @ w1.T + biases[0])
    h2 = sig(h1 @ w2.T + biases[1])
    return sig(h2 @ w3.T + biases[2])


if __name__ == "__main__":
    key = jax.random.PRNGKey(0)
    k_x, k_w1, k_w2, k_w3 = jax.random.split(key, 4)

    input_size, hidden, output_size = 2, 5, 2
    batch = 3000  # deliberately not a multiple of the tile -> exercises padding

    # Deterministic parameter init (PyTorch Linear-style uniform bounds).
    def uinit(k, shape, fan_in):
        bound = 1.0 / jnp.sqrt(fan_in)
        return jax.random.uniform(k, shape, jnp.float32, -bound, bound)

    w1 = uinit(k_w1, (hidden, input_size), input_size)    # l1.weight (out, in)
    w2 = uinit(k_w2, (hidden, hidden), hidden)            # l2.weight
    w3 = uinit(k_w3, (output_size, hidden), hidden)       # l3.weight
    biases = jnp.array([0.1, -0.2, 0.05], jnp.float32)    # bias1..3 (scalars)

    x = jax.random.normal(k_x, (batch, input_size), jnp.float32)
    y_ref = ffnn_reference(x, w1, w2, w3, biases)

    # 1) Small tiles -> multi-step grid + multi-chunk inner loop.
    y = jax.block_until_ready(
        ffnn_forward(x, w1, w2, w3, biases, block_rows=16, block_lanes=128))
    assert y.shape == (batch, output_size)
    assert jnp.allclose(y, y_ref, atol=1e-5, rtol=1e-5), "mismatch (small tiles)"

    # 2) Default (production) tiles -> adaptive single/dual-block path.
    y = jax.block_until_ready(ffnn_forward(x, w1, w2, w3, biases))
    assert jnp.allclose(y, y_ref, atol=1e-5, rtol=1e-5), "mismatch (default tiles)"

    # 3) bf16 streaming (halved HBM traffic; compute stays f32). Relaxed tol.
    x_bf = x.astype(jnp.bfloat16)
    y_bf = jax.block_until_ready(ffnn_forward(x_bf, w1, w2, w3, biases))
    y_bf_ref = ffnn_reference(x_bf.astype(jnp.float32), w1, w2, w3, biases)
    assert y_bf.dtype == jnp.bfloat16
    assert jnp.allclose(y_bf.astype(jnp.float32), y_bf_ref, atol=1.5e-2), \
        "mismatch (bf16 streaming)"

    # 4) Tiny-batch path: block shrinks instead of padding to a full block.
    x_small = x[:17]
    y_small = jax.block_until_ready(ffnn_forward(x_small, w1, w2, w3, biases))
    assert jnp.allclose(y_small, ffnn_reference(x_small, w1, w2, w3, biases),
                        atol=1e-5, rtol=1e-5), "mismatch (tiny batch)"

    print("KERNEL_OK")
</pallas_src>

<mosaic_0001>
module attributes {stable_mosaic.version = 11 : i64} {
  func.func @kernel(%arg0: i32, %arg1: memref<48xf32, #tpu.memory_space<smem>>, %arg2: memref<2x16x128xf32, #tpu.memory_space<vmem>>, %arg3: memref<2x16x128xf32, #tpu.memory_space<vmem>>) attributes {dimension_semantics = [#tpu.dimension_semantics<parallel>], iteration_bounds = array<i64: 2>, scalar_prefetch = 1 : i64, scratch_operands = 0 : i64, tpu.core_type = #tpu.core_type<tc>, window_params = [{transform_indices = @transform_0, window_bounds = array<i64: 2, 16, 128>}, {transform_indices = @transform_1, window_bounds = array<i64: 2, 16, 128>}]} {
    %c0 = arith.constant 0 : index
    %0 = memref.load %arg1[%c0] : memref<48xf32, #tpu.memory_space<smem>>
    %c1 = arith.constant 1 : index
    %1 = memref.load %arg1[%c1] : memref<48xf32, #tpu.memory_space<smem>>
    %c2 = arith.constant 2 : index
    %2 = memref.load %arg1[%c2] : memref<48xf32, #tpu.memory_space<smem>>
    %c3 = arith.constant 3 : index
    %3 = memref.load %arg1[%c3] : memref<48xf32, #tpu.memory_space<smem>>
    %c4 = arith.constant 4 : index
    %4 = memref.load %arg1[%c4] : memref<48xf32, #tpu.memory_space<smem>>
    %c5 = arith.constant 5 : index
    %5 = memref.load %arg1[%c5] : memref<48xf32, #tpu.memory_space<smem>>
    %c6 = arith.constant 6 : index
    %6 = memref.load %arg1[%c6] : memref<48xf32, #tpu.memory_space<smem>>
    %c7 = arith.constant 7 : index
    %7 = memref.load %arg1[%c7] : memref<48xf32, #tpu.memory_space<smem>>
    %c8 = arith.constant 8 : index
    %8 = memref.load %arg1[%c8] : memref<48xf32, #tpu.memory_space<smem>>
    %c9 = arith.constant 9 : index
    %9 = memref.load %arg1[%c9] : memref<48xf32, #tpu.memory_space<smem>>
    %c10 = arith.constant 10 : index
    %10 = memref.load %arg1[%c10] : memref<48xf32, #tpu.memory_space<smem>>
    %c11 = arith.constant 11 : index
    %11 = memref.load %arg1[%c11] : memref<48xf32, #tpu.memory_space<smem>>
    %c12 = arith.constant 12 : index
    %12 = memref.load %arg1[%c12] : memref<48xf32, #tpu.memory_space<smem>>
    %c13 = arith.constant 13 : index
    %13 = memref.load %arg1[%c13] : memref<48xf32, #tpu.memory_space<smem>>
    %c14 = arith.constant 14 : index
    %14 = memref.load %arg1[%c14] : memref<48xf32, #tpu.memory_space<smem>>
    %c15 = arith.constant 15 : index
    %15 = memref.load %arg1[%c15] : memref<48xf32, #tpu.memory_space<smem>>
    %c16 = arith.constant 16 : index
    %16 = memref.load %arg1[%c16] : memref<48xf32, #tpu.memory_space<smem>>
    %c17 = arith.constant 17 : index
    %17 = memref.load %arg1[%c17] : memref<48xf32, #tpu.memory_space<smem>>
    %c18 = arith.constant 18 : index
    %18 = memref.load %arg1[%c18] : memref<48xf32, #tpu.memory_space<smem>>
    %c19 = arith.constant 19 : index
    %19 = memref.load %arg1[%c19] : memref<48xf32, #tpu.memory_space<smem>>
    %c20 = arith.constant 20 : index
    %20 = memref.load %arg1[%c20] : memref<48xf32, #tpu.memory_space<smem>>
    %c21 = arith.constant 21 : index
    %21 = memref.load %arg1[%c21] : memref<48xf32, #tpu.memory_space<smem>>
    %c22 = arith.constant 22 : index
    %22 = memref.load %arg1[%c22] : memref<48xf32, #tpu.memory_space<smem>>
    %c23 = arith.constant 23 : index
    %23 = memref.load %arg1[%c23] : memref<48xf32, #tpu.memory_space<smem>>
    %c24 = arith.constant 24 : index
    %24 = memref.load %arg1[%c24] : memref<48xf32, #tpu.memory_space<smem>>
    %c25 = arith.constant 25 : index
    %25 = memref.load %arg1[%c25] : memref<48xf32, #tpu.memory_space<smem>>
    %c26 = arith.constant 26 : index
    %26 = memref.load %arg1[%c26] : memref<48xf32, #tpu.memory_space<smem>>
    %c27 = arith.constant 27 : index
    %27 = memref.load %arg1[%c27] : memref<48xf32, #tpu.memory_space<smem>>
    %c28 = arith.constant 28 : index
    %28 = memref.load %arg1[%c28] : memref<48xf32, #tpu.memory_space<smem>>
    %c29 = arith.constant 29 : index
    %29 = memref.load %arg1[%c29] : memref<48xf32, #tpu.memory_space<smem>>
    %c30 = arith.constant 30 : index
    %30 = memref.load %arg1[%c30] : memref<48xf32, #tpu.memory_space<smem>>
    %c31 = arith.constant 31 : index
    %31 = memref.load %arg1[%c31] : memref<48xf32, #tpu.memory_space<smem>>
    %c32 = arith.constant 32 : index
    %32 = memref.load %arg1[%c32] : memref<48xf32, #tpu.memory_space<smem>>
    %c33 = arith.constant 33 : index
    %33 = memref.load %arg1[%c33] : memref<48xf32, #tpu.memory_space<smem>>
    %c34 = arith.constant 34 : index
    %34 = memref.load %arg1[%c34] : memref<48xf32, #tpu.memory_space<smem>>
    %c35 = arith.constant 35 : index
    %35 = memref.load %arg1[%c35] : memref<48xf32, #tpu.memory_space<smem>>
    %c36 = arith.constant 36 : index
    %36 = memref.load %arg1[%c36] : memref<48xf32, #tpu.memory_space<smem>>
    %c37 = arith.constant 37 : index
    %37 = memref.load %arg1[%c37] : memref<48xf32, #tpu.memory_space<smem>>
    %c38 = arith.constant 38 : index
    %38 = memref.load %arg1[%c38] : memref<48xf32, #tpu.memory_space<smem>>
    %c39 = arith.constant 39 : index
    %39 = memref.load %arg1[%c39] : memref<48xf32, #tpu.memory_space<smem>>
    %c40 = arith.constant 40 : index
    %40 = memref.load %arg1[%c40] : memref<48xf32, #tpu.memory_space<smem>>
    %c41 = arith.constant 41 : index
    %41 = memref.load %arg1[%c41] : memref<48xf32, #tpu.memory_space<smem>>
    %c42 = arith.constant 42 : index
    %42 = memref.load %arg1[%c42] : memref<48xf32, #tpu.memory_space<smem>>
    %c43 = arith.constant 43 : index
    %43 = memref.load %arg1[%c43] : memref<48xf32, #tpu.memory_space<smem>>
    %c44 = arith.constant 44 : index
    %44 = memref.load %arg1[%c44] : memref<48xf32, #tpu.memory_space<smem>>
    %c45 = arith.constant 45 : index
    %45 = memref.load %arg1[%c45] : memref<48xf32, #tpu.memory_space<smem>>
    %c46 = arith.constant 46 : index
    %46 = memref.load %arg1[%c46] : memref<48xf32, #tpu.memory_space<smem>>
    %c47 = arith.constant 47 : index
    %47 = memref.load %arg1[%c47] : memref<48xf32, #tpu.memory_space<smem>>
    %c0_i32 = arith.constant 0 : i32
    %c8_i32 = arith.constant 8 : i32
    %48 = arith.muli %c0_i32, %c8_i32 : i32
    %49 = tpu.assume_multiple %48, 8 : i32
    %c0_0 = arith.constant 0 : index
    %50 = arith.index_cast %49 : i32 to index
    %c0_1 = arith.constant 0 : index
    %51 = vector.load %arg2[%c0_0, %50, %c0_1] : memref<2x16x128xf32, #tpu.memory_space<vmem>>, vector<1x8x128xf32>
    %52 = vector.shape_cast %51 : vector<1x8x128xf32> to vector<8x128xf32>
    %c1_2 = arith.constant 1 : index
    %53 = arith.index_cast %49 : i32 to index
    %c0_3 = arith.constant 0 : index
    %54 = vector.load %arg2[%c1_2, %53, %c0_3] : memref<2x16x128xf32, #tpu.memory_space<vmem>>, vector<1x8x128xf32>
    %55 = vector.shape_cast %54 : vector<1x8x128xf32> to vector<8x128xf32>
    %56 = vector.broadcast %0 : f32 to vector<8x128xf32>
    %57 = arith.mulf %56, %52 : vector<8x128xf32>
    %58 = vector.broadcast %1 : f32 to vector<8x128xf32>
    %59 = arith.mulf %58, %55 : vector<8x128xf32>
    %60 = arith.addf %57, %59 : vector<8x128xf32>
    %61 = vector.broadcast %45 : f32 to vector<8x128xf32>
    %62 = arith.addf %60, %61 : vector<8x128xf32>
    %63 = math.tanh %62 : vector<8x128xf32>
    %64 = vector.broadcast %2 : f32 to vector<8x128xf32>
    %65 = arith.mulf %64, %52 : vector<8x128xf32>
    %66 = vector.broadcast %3 : f32 to vector<8x128xf32>
    %67 = arith.mulf %66, %55 : vector<8x128xf32>
    %68 = arith.addf %65, %67 : vector<8x128xf32>
    %69 = vector.broadcast %45 : f32 to vector<8x128xf32>
    %70 = arith.addf %68, %69 : vector<8x128xf32>
    %71 = math.tanh %70 : vector<8x128xf32>
    %72 = vector.broadcast %4 : f32 to vector<8x128xf32>
    %73 = arith.mulf %72, %52 : vector<8x128xf32>
    %74 = vector.broadcast %5 : f32 to vector<8x128xf32>
    %75 = arith.mulf %74, %55 : vector<8x128xf32>
    %76 = arith.addf %73, %75 : vector<8x128xf32>
    %77 = vector.broadcast %45 : f32 to vector<8x128xf32>
    %78 = arith.addf %76, %77 : vector<8x128xf32>
    %79 = math.tanh %78 : vector<8x128xf32>
    %80 = vector.broadcast %6 : f32 to vector<8x128xf32>
    %81 = arith.mulf %80, %52 : vector<8x128xf32>
    %82 = vector.broadcast %7 : f32 to vector<8x128xf32>
    %83 = arith.mulf %82, %55 : vector<8x128xf32>
    %84 = arith.addf %81, %83 : vector<8x128xf32>
    %85 = vector.broadcast %45 : f32 to vector<8x128xf32>
    %86 = arith.addf %84, %85 : vector<8x128xf32>
    %87 = math.tanh %86 : vector<8x128xf32>
    %88 = vector.broadcast %8 : f32 to vector<8x128xf32>
    %89 = arith.mulf %88, %52 : vector<8x128xf32>
    %90 = vector.broadcast %9 : f32 to vector<8x128xf32>
    %91 = arith.mulf %90, %55 : vector<8x128xf32>
    %92 = arith.addf %89, %91 : vector<8x128xf32>
    %93 = vector.broadcast %45 : f32 to vector<8x128xf32>
    %94 = arith.addf %92, %93 : vector<8x128xf32>
    %95 = math.tanh %94 : vector<8x128xf32>
    %96 = vector.broadcast %10 : f32 to vector<8x128xf32>
    %97 = arith.mulf %96, %63 : vector<8x128xf32>
    %98 = vector.broadcast %11 : f32 to vector<8x128xf32>
    %99 = arith.mulf %98, %71 : vector<8x128xf32>
    %100 = arith.addf %97, %99 : vector<8x128xf32>
    %101 = vector.broadcast %12 : f32 to vector<8x128xf32>
    %102 = arith.mulf %101, %79 : vector<8x128xf32>
    %103 = arith.addf %100, %102 : vector<8x128xf32>
    %104 = vector.broadcast %13 : f32 to vector<8x128xf32>
    %105 = arith.mulf %104, %87 : vector<8x128xf32>
    %106 = arith.addf %103, %105 : vector<8x128xf32>
    %107 = vector.broadcast %14 : f32 to vector<8x128xf32>
    %108 = arith.mulf %107, %95 : vector<8x128xf32>
    %109 = arith.addf %106, %108 : vector<8x128xf32>
    %110 = vector.broadcast %46 : f32 to vector<8x128xf32>
    %111 = arith.addf %109, %110 : vector<8x128xf32>
    %112 = math.tanh %111 : vector<8x128xf32>
    %113 = vector.broadcast %15 : f32 to vector<8x128xf32>
    %114 = arith.mulf %113, %63 : vector<8x128xf32>
    %115 = vector.broadcast %16 : f32 to vector<8x128xf32>
    %116 = arith.mulf %115, %71 : vector<8x128xf32>
    %117 = arith.addf %114, %116 : vector<8x128xf32>
    %118 = vector.broadcast %17 : f32 to vector<8x128xf32>
    %119 = arith.mulf %118, %79 : vector<8x128xf32>
    %120 = arith.addf %117, %119 : vector<8x128xf32>
    %121 = vector.broadcast %18 : f32 to vector<8x128xf32>
    %122 = arith.mulf %121, %87 : vector<8x128xf32>
    %123 = arith.addf %120, %122 : vector<8x128xf32>
    %124 = vector.broadcast %19 : f32 to vector<8x128xf32>
    %125 = arith.mulf %124, %95 : vector<8x128xf32>
    %126 = arith.addf %123, %125 : vector<8x128xf32>
    %127 = vector.broadcast %46 : f32 to vector<8x128xf32>
    %128 = arith.addf %126, %127 : vector<8x128xf32>
    %129 = math.tanh %128 : vector<8x128xf32>
    %130 = vector.broadcast %20 : f32 to vector<8x128xf32>
    %131 = arith.mulf %130, %63 : vector<8x128xf32>
    %132 = vector.broadcast %21 : f32 to vector<8x128xf32>
    %133 = arith.mulf %132, %71 : vector<8x128xf32>
    %134 = arith.addf %131, %133 : vector<8x128xf32>
    %135 = vector.broadcast %22 : f32 to vector<8x128xf32>
    %136 = arith.mulf %135, %79 : vector<8x128xf32>
    %137 = arith.addf %134, %136 : vector<8x128xf32>
    %138 = vector.broadcast %23 : f32 to vector<8x128xf32>
    %139 = arith.mulf %138, %87 : vector<8x128xf32>
    %140 = arith.addf %137, %139 : vector<8x128xf32>
    %141 = vector.broadcast %24 : f32 to vector<8x128xf32>
    %142 = arith.mulf %141, %95 : vector<8x128xf32>
    %143 = arith.addf %140, %142 : vector<8x128xf32>
    %144 = vector.broadcast %46 : f32 to vector<8x128xf32>
    %145 = arith.addf %143, %144 : vector<8x128xf32>
    %146 = math.tanh %145 : vector<8x128xf32>
    %147 = vector.broadcast %25 : f32 to vector<8x128xf32>
    %148 = arith.mulf %147, %63 : vector<8x128xf32>
    %149 = vector.broadcast %26 : f32 to vector<8x128xf32>
    %150 = arith.mulf %149, %71 : vector<8x128xf32>
    %151 = arith.addf %148, %150 : vector<8x128xf32>
    %152 = vector.broadcast %27 : f32 to vector<8x128xf32>
    %153 = arith.mulf %152, %79 : vector<8x128xf32>
    %154 = arith.addf %151, %153 : vector<8x128xf32>
    %155 = vector.broadcast %28 : f32 to vector<8x128xf32>
    %156 = arith.mulf %155, %87 : vector<8x128xf32>
    %157 = arith.addf %154, %156 : vector<8x128xf32>
    %158 = vector.broadcast %29 : f32 to vector<8x128xf32>
    %159 = arith.mulf %158, %95 : vector<8x128xf32>
    %160 = arith.addf %157, %159 : vector<8x128xf32>
    %161 = vector.broadcast %46 : f32 to vector<8x128xf32>
    %162 = arith.addf %160, %161 : vector<8x128xf32>
    %163 = math.tanh %162 : vector<8x128xf32>
    %164 = vector.broadcast %30 : f32 to vector<8x128xf32>
    %165 = arith.mulf %164, %63 : vector<8x128xf32>
    %166 = vector.broadcast %31 : f32 to vector<8x128xf32>
    %167 = arith.mulf %166, %71 : vector<8x128xf32>
    %168 = arith.addf %165, %167 : vector<8x128xf32>
    %169 = vector.broadcast %32 : f32 to vector<8x128xf32>
    %170 = arith.mulf %169, %79 : vector<8x128xf32>
    %171 = arith.addf %168, %170 : vector<8x128xf32>
    %172 = vector.broadcast %33 : f32 to vector<8x128xf32>
    %173 = arith.mulf %172, %87 : vector<8x128xf32>
    %174 = arith.addf %171, %173 : vector<8x128xf32>
    %175 = vector.broadcast %34 : f32 to vector<8x128xf32>
    %176 = arith.mulf %175, %95 : vector<8x128xf32>
    %177 = arith.addf %174, %176 : vector<8x128xf32>
    %178 = vector.broadcast %46 : f32 to vector<8x128xf32>
    %179 = arith.addf %177, %178 : vector<8x128xf32>
    %180 = math.tanh %179 : vector<8x128xf32>
    %181 = vector.broadcast %35 : f32 to vector<8x128xf32>
    %182 = arith.mulf %181, %112 : vector<8x128xf32>
    %183 = vector.broadcast %36 : f32 to vector<8x128xf32>
    %184 = arith.mulf %183, %129 : vector<8x128xf32>
    %185 = arith.addf %182, %184 : vector<8x128xf32>
    %186 = vector.broadcast %37 : f32 to vector<8x128xf32>
    %187 = arith.mulf %186, %146 : vector<8x128xf32>
    %188 = arith.addf %185, %187 : vector<8x128xf32>
    %189 = vector.broadcast %38 : f32 to vector<8x128xf32>
    %190 = arith.mulf %189, %163 : vector<8x128xf32>
    %191 = arith.addf %188, %190 : vector<8x128xf32>
    %192 = vector.broadcast %39 : f32 to vector<8x128xf32>
    %193 = arith.mulf %192, %180 : vector<8x128xf32>
    %194 = arith.addf %191, %193 : vector<8x128xf32>
    %195 = vector.broadcast %47 : f32 to vector<8x128xf32>
    %196 = arith.addf %194, %195 : vector<8x128xf32>
    %197 = math.tanh %196 : vector<8x128xf32>
    %198 = vector.broadcast %40 : f32 to vector<8x128xf32>
    %199 = arith.mulf %198, %112 : vector<8x128xf32>
    %200 = vector.broadcast %41 : f32 to vector<8x128xf32>
    %201 = arith.mulf %200, %129 : vector<8x128xf32>
    %202 = arith.addf %199, %201 : vector<8x128xf32>
    %203 = vector.broadcast %42 : f32 to vector<8x128xf32>
    %204 = arith.mulf %203, %146 : vector<8x128xf32>
    %205 = arith.addf %202, %204 : vector<8x128xf32>
    %206 = vector.broadcast %43 : f32 to vector<8x128xf32>
    %207 = arith.mulf %206, %163 : vector<8x128xf32>
    %208 = arith.addf %205, %207 : vector<8x128xf32>
    %209 = vector.broadcast %44 : f32 to vector<8x128xf32>
    %210 = arith.mulf %209, %180 : vector<8x128xf32>
    %211 = arith.addf %208, %210 : vector<8x128xf32>
    %212 = vector.broadcast %47 : f32 to vector<8x128xf32>
    %213 = arith.addf %211, %212 : vector<8x128xf32>
    %214 = math.tanh %213 : vector<8x128xf32>
    %c0_4 = arith.constant 0 : index
    %215 = arith.index_cast %49 : i32 to index
    %c0_5 = arith.constant 0 : index
    %216 = vector.load %arg3[%c0_4, %215, %c0_5] : memref<2x16x128xf32, #tpu.memory_space<vmem>>, vector<1x8x128xf32>
    %217 = vector.shape_cast %216 : vector<1x8x128xf32> to vector<8x128xf32>
    %218 = vector.shape_cast %197 : vector<8x128xf32> to vector<1x8x128xf32>
    tpu.vector_store %arg3[%c0_4, %215, %c0_5], %218 {strides = array<i32>} : memref<2x16x128xf32, #tpu.memory_space<vmem>>, vector<1x8x128xf32>,
    %c1_6 = arith.constant 1 : index
    %219 = arith.index_cast %49 : i32 to index
    %c0_7 = arith.constant 0 : index
    %220 = vector.load %arg3[%c1_6, %219, %c0_7] : memref<2x16x128xf32, #tpu.memory_space<vmem>>, vector<1x8x128xf32>
    %221 = vector.shape_cast %220 : vector<1x8x128xf32> to vector<8x128xf32>
    %222 = vector.shape_cast %214 : vector<8x128xf32> to vector<1x8x128xf32>
    tpu.vector_store %arg3[%c1_6, %219, %c0_7], %222 {strides = array<i32>} : memref<2x16x128xf32, #tpu.memory_space<vmem>>, vector<1x8x128xf32>,
    %c1_i32 = arith.constant 1 : i32
    %c8_i32_8 = arith.constant 8 : i32
    %223 = arith.muli %c1_i32, %c8_i32_8 : i32
    %224 = tpu.assume_multiple %223, 8 : i32
    %c0_9 = arith.constant 0 : index
    %225 = arith.index_cast %224 : i32 to index
    %c0_10 = arith.constant 0 : index
    %226 = vector.load %arg2[%c0_9, %225, %c0_10] : memref<2x16x128xf32, #tpu.memory_space<vmem>>, vector<1x8x128xf32>
    %227 = vector.shape_cast %226 : vector<1x8x128xf32> to vector<8x128xf32>
    %c1_11 = arith.constant 1 : index
    %228 = arith.index_cast %224 : i32 to index
    %c0_12 = arith.constant 0 : index
    %229 = vector.load %arg2[%c1_11, %228, %c0_12] : memref<2x16x128xf32, #tpu.memory_space<vmem>>, vector<1x8x128xf32>
    %230 = vector.shape_cast %229 : vector<1x8x128xf32> to vector<8x128xf32>
    %231 = vector.broadcast %0 : f32 to vector<8x128xf32>
    %232 = arith.mulf %231, %227 : vector<8x128xf32>
    %233 = vector.broadcast %1 : f32 to vector<8x128xf32>
    %234 = arith.mulf %233, %230 : vector<8x128xf32>
    %235 = arith.addf %232, %234 : vector<8x128xf32>
    %236 = vector.broadcast %45 : f32 to vector<8x128xf32>
    %237 = arith.addf %235, %236 : vector<8x128xf32>
    %238 = math.tanh %237 : vector<8x128xf32>
    %239 = vector.broadcast %2 : f32 to vector<8x128xf32>
    %240 = arith.mulf %239, %227 : vector<8x128xf32>
    %241 = vector.broadcast %3 : f32 to vector<8x128xf32>
    %242 = arith.mulf %241, %230 : vector<8x128xf32>
    %243 = arith.addf %240, %242 : vector<8x128xf32>
    %244 = vector.broadcast %45 : f32 to vector<8x128xf32>
    %245 = arith.addf %243, %244 : vector<8x128xf32>
    %246 = math.tanh %245 : vector<8x128xf32>
    %247 = vector.broadcast %4 : f32 to vector<8x128xf32>
    %248 = arith.mulf %247, %227 : vector<8x128xf32>
    %249 = vector.broadcast %5 : f32 to vector<8x128xf32>
    %250 = arith.mulf %249, %230 : vector<8x128xf32>
    %251 = arith.addf %248, %250 : vector<8x128xf32>
    %252 = vector.broadcast %45 : f32 to vector<8x128xf32>
    %253 = arith.addf %251, %252 : vector<8x128xf32>
    %254 = math.tanh %253 : vector<8x128xf32>
    %255 = vector.broadcast %6 : f32 to vector<8x128xf32>
    %256 = arith.mulf %255, %227 : vector<8x128xf32>
    %257 = vector.broadcast %7 : f32 to vector<8x128xf32>
    %258 = arith.mulf %257, %230 : vector<8x128xf32>
    %259 = arith.addf %256, %258 : vector<8x128xf32>
    %260 = vector.broadcast %45 : f32 to vector<8x128xf32>
    %261 = arith.addf %259, %260 : vector<8x128xf32>
    %262 = math.tanh %261 : vector<8x128xf32>
    %263 = vector.broadcast %8 : f32 to vector<8x128xf32>
    %264 = arith.mulf %263, %227 : vector<8x128xf32>
    %265 = vector.broadcast %9 : f32 to vector<8x128xf32>
    %266 = arith.mulf %265, %230 : vector<8x128xf32>
    %267 = arith.addf %264, %266 : vector<8x128xf32>
    %268 = vector.broadcast %45 : f32 to vector<8x128xf32>
    %269 = arith.addf %267, %268 : vector<8x128xf32>
    %270 = math.tanh %269 : vector<8x128xf32>
    %271 = vector.broadcast %10 : f32 to vector<8x128xf32>
    %272 = arith.mulf %271, %238 : vector<8x128xf32>
    %273 = vector.broadcast %11 : f32 to vector<8x128xf32>
    %274 = arith.mulf %273, %246 : vector<8x128xf32>
    %275 = arith.addf %272, %274 : vector<8x128xf32>
    %276 = vector.broadcast %12 : f32 to vector<8x128xf32>
    %277 = arith.mulf %276, %254 : vector<8x128xf32>
    %278 = arith.addf %275, %277 : vector<8x128xf32>
    %279 = vector.broadcast %13 : f32 to vector<8x128xf32>
    %280 = arith.mulf %279, %262 : vector<8x128xf32>
    %281 = arith.addf %278, %280 : vector<8x128xf32>
    %282 = vector.broadcast %14 : f32 to vector<8x128xf32>
    %283 = arith.mulf %282, %270 : vector<8x128xf32>
    %284 = arith.addf %281, %283 : vector<8x128xf32>
    %285 = vector.broadcast %46 : f32 to vector<8x128xf32>
    %286 = arith.addf %284, %285 : vector<8x128xf32>
    %287 = math.tanh %286 : vector<8x128xf32>
    %288 = vector.broadcast %15 : f32 to vector<8x128xf32>
    %289 = arith.mulf %288, %238 : vector<8x128xf32>
    %290 = vector.broadcast %16 : f32 to vector<8x128xf32>
    %291 = arith.mulf %290, %246 : vector<8x128xf32>
    %292 = arith.addf %289, %291 : vector<8x128xf32>
    %293 = vector.broadcast %17 : f32 to vector<8x128xf32>
    %294 = arith.mulf %293, %254 : vector<8x128xf32>
    %295 = arith.addf %292, %294 : vector<8x128xf32>
    %296 = vector.broadcast %18 : f32 to vector<8x128xf32>
    %297 = arith.mulf %296, %262 : vector<8x128xf32>
    %298 = arith.addf %295, %297 : vector<8x128xf32>
    %299 = vector.broadcast %19 : f32 to vector<8x128xf32>
    %300 = arith.mulf %299, %270 : vector<8x128xf32>
    %301 = arith.addf %298, %300 : vector<8x128xf32>
    %302 = vector.broadcast %46 : f32 to vector<8x128xf32>
    %303 = arith.addf %301, %302 : vector<8x128xf32>
    %304 = math.tanh %303 : vector<8x128xf32>
    %305 = vector.broadcast %20 : f32 to vector<8x128xf32>
    %306 = arith.mulf %305, %238 : vector<8x128xf32>
    %307 = vector.broadcast %21 : f32 to vector<8x128xf32>
    %308 = arith.mulf %307, %246 : vector<8x128xf32>
    %309 = arith.addf %306, %308 : vector<8x128xf32>
    %310 = vector.broadcast %22 : f32 to vector<8x128xf32>
    %311 = arith.mulf %310, %254 : vector<8x128xf32>
    %312 = arith.addf %309, %311 : vector<8x128xf32>
    %313 = vector.broadcast %23 : f32 to vector<8x128xf32>
    %314 = arith.mulf %313, %262 : vector<8x128xf32>
    %315 = arith.addf %312, %314 : vector<8x128xf32>
    %316 = vector.broadcast %24 : f32 to vector<8x128xf32>
    %317 = arith.mulf %316, %270 : vector<8x128xf32>
    %318 = arith.addf %315, %317 : vector<8x128xf32>
    %319 = vector.broadcast %46 : f32 to vector<8x128xf32>
    %320 = arith.addf %318, %319 : vector<8x128xf32>
    %321 = math.tanh %320 : vector<8x128xf32>
    %322 = vector.broadcast %25 : f32 to vector<8x128xf32>
    %323 = arith.mulf %322, %238 : vector<8x128xf32>
    %324 = vector.broadcast %26 : f32 to vector<8x128xf32>
    %325 = arith.mulf %324, %246 : vector<8x128xf32>
    %326 = arith.addf %323, %325 : vector<8x128xf32>
    %327 = vector.broadcast %27 : f32 to vector<8x128xf32>
    %328 = arith.mulf %327, %254 : vector<8x128xf32>
    %329 = arith.addf %326, %328 : vector<8x128xf32>
    %330 = vector.broadcast %28 : f32 to vector<8x128xf32>
    %331 = arith.mulf %330, %262 : vector<8x128xf32>
    %332 = arith.addf %329, %331 : vector<8x128xf32>
    %333 = vector.broadcast %29 : f32 to vector<8x128xf32>
    %334 = arith.mulf %333, %270 : vector<8x128xf32>
    %335 = arith.addf %332, %334 : vector<8x128xf32>
    %336 = vector.broadcast %46 : f32 to vector<8x128xf32>
    %337 = arith.addf %335, %336 : vector<8x128xf32>
    %338 = math.tanh %337 : vector<8x128xf32>
    %339 = vector.broadcast %30 : f32 to vector<8x128xf32>
    %340 = arith.mulf %339, %238 : vector<8x128xf32>
    %341 = vector.broadcast %31 : f32 to vector<8x128xf32>
    %342 = arith.mulf %341, %246 : vector<8x128xf32>
    %343 = arith.addf %340, %342 : vector<8x128xf32>
    %344 = vector.broadcast %32 : f32 to vector<8x128xf32>
    %345 = arith.mulf %344, %254 : vector<8x128xf32>
    %346 = arith.addf %343, %345 : vector<8x128xf32>
    %347 = vector.broadcast %33 : f32 to vector<8x128xf32>
    %348 = arith.mulf %347, %262 : vector<8x128xf32>
    %349 = arith.addf %346, %348 : vector<8x128xf32>
    %350 = vector.broadcast %34 : f32 to vector<8x128xf32>
    %351 = arith.mulf %350, %270 : vector<8x128xf32>
    %352 = arith.addf %349, %351 : vector<8x128xf32>
    %353 = vector.broadcast %46 : f32 to vector<8x128xf32>
    %354 = arith.addf %352, %353 : vector<8x128xf32>
    %355 = math.tanh %354 : vector<8x128xf32>
    %356 = vector.broadcast %35 : f32 to vector<8x128xf32>
    %357 = arith.mulf %356, %287 : vector<8x128xf32>
    %358 = vector.broadcast %36 : f32 to vector<8x128xf32>
    %359 = arith.mulf %358, %304 : vector<8x128xf32>
    %360 = arith.addf %357, %359 : vector<8x128xf32>
    %361 = vector.broadcast %37 : f32 to vector<8x128xf32>
    %362 = arith.mulf %361, %321 : vector<8x128xf32>
    %363 = arith.addf %360, %362 : vector<8x128xf32>
    %364 = vector.broadcast %38 : f32 to vector<8x128xf32>
    %365 = arith.mulf %364, %338 : vector<8x128xf32>
    %366 = arith.addf %363, %365 : vector<8x128xf32>
    %367 = vector.broadcast %39 : f32 to vector<8x128xf32>
    %368 = arith.mulf %367, %355 : vector<8x128xf32>
    %369 = arith.addf %366, %368 : vector<8x128xf32>
    %370 = vector.broadcast %47 : f32 to vector<8x128xf32>
    %371 = arith.addf %369, %370 : vector<8x128xf32>
    %372 = math.tanh %371 : vector<8x128xf32>
    %373 = vector.broadcast %40 : f32 to vector<8x128xf32>
    %374 = arith.mulf %373, %287 : vector<8x128xf32>
    %375 = vector.broadcast %41 : f32 to vector<8x128xf32>
    %376 = arith.mulf %375, %304 : vector<8x128xf32>
    %377 = arith.addf %374, %376 : vector<8x128xf32>
    %378 = vector.broadcast %42 : f32 to vector<8x128xf32>
    %379 = arith.mulf %378, %321 : vector<8x128xf32>
    %380 = arith.addf %377, %379 : vector<8x128xf32>
    %381 = vector.broadcast %43 : f32 to vector<8x128xf32>
    %382 = arith.mulf %381, %338 : vector<8x128xf32>
    %383 = arith.addf %380, %382 : vector<8x128xf32>
    %384 = vector.broadcast %44 : f32 to vector<8x128xf32>
    %385 = arith.mulf %384, %355 : vector<8x128xf32>
    %386 = arith.addf %383, %385 : vector<8x128xf32>
    %387 = vector.broadcast %47 : f32 to vector<8x128xf32>
    %388 = arith.addf %386, %387 : vector<8x128xf32>
    %389 = math.tanh %388 : vector<8x128xf32>
    %c0_13 = arith.constant 0 : index
    %390 = arith.index_cast %224 : i32 to index
    %c0_14 = arith.constant 0 : index
    %391 = vector.load %arg3[%c0_13, %390, %c0_14] : memref<2x16x128xf32, #tpu.memory_space<vmem>>, vector<1x8x128xf32>
    %392 = vector.shape_cast %391 : vector<1x8x128xf32> to vector<8x128xf32>
    %393 = vector.shape_cast %372 : vector<8x128xf32> to vector<1x8x128xf32>
    tpu.vector_store %arg3[%c0_13, %390, %c0_14], %393 {strides = array<i32>} : memref<2x16x128xf32, #tpu.memory_space<vmem>>, vector<1x8x128xf32>,
    %c1_15 = arith.constant 1 : index
    %394 = arith.index_cast %224 : i32 to index
    %c0_16 = arith.constant 0 : index
    %395 = vector.load %arg3[%c1_15, %394, %c0_16] : memref<2x16x128xf32, #tpu.memory_space<vmem>>, vector<1x8x128xf32>
    %396 = vector.shape_cast %395 : vector<1x8x128xf32> to vector<8x128xf32>
    %397 = vector.shape_cast %389 : vector<8x128xf32> to vector<1x8x128xf32>
    tpu.vector_store %arg3[%c1_15, %394, %c0_16], %397 {strides = array<i32>} : memref<2x16x128xf32, #tpu.memory_space<vmem>>, vector<1x8x128xf32>,
    %c2_i32 = arith.constant 2 : i32
    return
  }
  func.func @transform_0(%arg0: i32, %arg1: memref<48xf32, #tpu.memory_space<smem>>) -> (i32, i32, i32) {
    %c0_i32 = arith.constant 0 : i32
    %c0_i32_0 = arith.constant 0 : i32
    %c0_i32_1 = arith.constant 0 : i32
    return %c0_i32, %arg0, %c0_i32_0 : i32, i32, i32
  }
  func.func @transform_1(%arg0: i32, %arg1: memref<48xf32, #tpu.memory_space<smem>>) -> (i32, i32, i32) {
    %c0_i32 = arith.constant 0 : i32
    %c0_i32_0 = arith.constant 0 : i32
    %c0_i32_1 = arith.constant 0 : i32
    return %c0_i32, %arg0, %c0_i32_0 : i32, i32, i32
  }
}

</mosaic_0001>

<llo_original>
// kernel: tpu_custom_call.1
$region0: #{tpu_custom_call.1}
  #allocation0 [shape = 'u32[]', space=smem, size = 0x4, offset = 0x4, fixed_abs, tag = 'smem constant byte address 0x4 - core index']
  #allocation1 [shape = 'u32[144,128]{1,0:T(1,128)}', space=vmem, size = 0x12000, scoped, tag = 'internal scratch']
  #allocation2 [shape = 's32[1]{0}', space=sflag, size = 0x4, scoped, tag = 'scoped memory for tpu_custom_call.1']
  #allocation3 [shape = 'u8[512]{0}', space=smem, size = 0x200, scoped, tag = 'prefetched SMEM operand 0']
  #allocation8 [shape = 's32[]', space=sflag, size = 0x4, offset = 0, fixed_abs, tag = 'sflag constant byte address 0x0 - dummy sync flag']
  #allocation10 [shape = 's32[]', space=sflag, size = 0x4, offset = 0, fixed_abs, tag = 'sflag constant byte address 0x0 - dummy sync flag']
  %s0 = inlined_call_operand.hbm [shape: f32[48], index: 0, kind: input, shape index: {}]
  %s1 = inlined_call_operand.hbm [shape: f32[2,32,128], index: 1, kind: input, shape index: {}]
  %s2 = inlined_call_operand.hbm [shape: f32[2,32,128], index: 2, kind: output, shape index: {}]
  %s3 = sld [smem:[#allocation0]]
  $region41: #{tpu_custom_call.1} parent=0
    _
  %s5 = ssub.s32 1, %s3
  %s6 = scalar_select 0, %s5, %s3
  %8 = dma.hbm_to_smem %s0, 16, [#allocation3], [#allocation2]
  %9 = dma.done [#allocation2], 16
  %10 = sfence
  $region1: #{tpu_custom_call.1} parent=0
    #allocation4 [shape = 'u8[32768]{0}', space=vmem, size = 0x8000, scoped, tag = 'input window, operand 1']
    #allocation5 [shape = 's32[2]{0}', space=sflag, size = 0x8, scoped, tag = 'scoped memory for tpu_custom_call.1']
    #allocation6 [shape = 's32[2]{0}', space=sflag, size = 0x8, scoped, tag = 'scoped memory for tpu_custom_call.1']
    #allocation7 [shape = 'u8[32768]{0}', space=vmem, size = 0x8000, scoped, tag = 'output window, operand 0']
    %11 = vsyncpa [#allocation5], 0
    %s12 = scalar_lea.sflag [#allocation5], 1
    %13 = vsyncpa %s12, 0
    %14 = vsyncpa [#allocation6], 0
    %s15 = scalar_lea.sflag [#allocation6], 1
    %16 = vsyncpa %s15, 0
    loop: start=0, step=1, limit=4
    $region2: #{tpu_custom_call.1} parent=1 // loop_pre_header
      _
    $region3: #{tpu_custom_call.1} parent=1 // loop_header
      %s18 = sphi 0, %s22
      %p19 = scmp.ge.s32.totalorder %s18, 4
      %s28 = sphi 0, %s30
      %s31 = sphi 0, %s28
      %s32 = sphi 0, %s31
      %s48 = sphi 0, %s32
      %s54 = sphi 0, %s56
      %s57 = sphi 0, %s54
      %s58 = sphi 0, %s57
      %s74 = sphi 0, %s58
    $region4: #{tpu_custom_call.1} parent=1 // loop_header_branch
      %21 = sbr.rel (%p19) target = $region8
    $region5: #{tpu_custom_call.1} parent=1 // loop_body
      %s23 = ssub.s32 %s18, 1
      %s24 = ssub.s32 %s18, 2
      %s25 = sadd.s32 %s18, 1
      %s26 = ssub.s32 %s18, %s25
      %p27 = scmp.eq.s32.totalorder %s26, 0
      %s29 = sadd.s32 %s28, 1
      %s30 = scalar_select %p27, %s28, %s29
      %p33 = pneg %p27
      %p34 = scmp.eq.s32.totalorder %s18, 1
      %p35 = por %p33, %p34
      %p36 = scmp.ne.s32.totalorder %s28, %s31
      %p37 = scmp.eq.s32.totalorder %s18, 0
      %p38 = por %p36, %p37
      %p39 = scmp.ne.s32.totalorder %s28, %s31
      %p40 = scmp.eq.s32.totalorder %s23, 1
      %p41 = por %p39, %p40
      %p42 = scmp.ne.s32.totalorder %s31, %s32
      %p43 = scmp.eq.s32.totalorder %s23, 0
      %p44 = por %p42, %p43
      %p45 = scmp.ne.s32.totalorder %s31, %s32
      %p46 = scmp.eq.s32.totalorder %s24, 1
      %p47 = por %p45, %p46
      %p49 = scmp.ne.s32.totalorder %s32, %s48
      %p50 = scmp.eq.s32.totalorder %s24, 0
      %p51 = por %p49, %p50
      %s52 = ssub.s32 %s18, %s25
      %p53 = scmp.eq.s32.totalorder %s52, 0
      %s55 = sadd.s32 %s54, 1
      %s56 = scalar_select %p53, %s54, %s55
      %p59 = pneg %p53
      %p60 = scmp.eq.s32.totalorder %s18, 1
      %p61 = por %p59, %p60
      %p62 = scmp.ne.s32.totalorder %s54, %s57
      %p63 = scmp.eq.s32.totalorder %s18, 0
      %p64 = por %p62, %p63
      %p65 = scmp.ne.s32.totalorder %s54, %s57
      %p66 = scmp.eq.s32.totalorder %s23, 1
      %p67 = por %p65, %p66
      %p68 = scmp.ne.s32.totalorder %s57, %s58
      %p69 = scmp.eq.s32.totalorder %s23, 0
      %p70 = por %p68, %p69
      %p71 = scmp.ne.s32.totalorder %s57, %s58
      %p72 = scmp.eq.s32.totalorder %s24, 1
      %p73 = por %p71, %p72
      %p75 = scmp.ne.s32.totalorder %s58, %s74
      %p76 = scmp.eq.s32.totalorder %s24, 0
      %p77 = por %p75, %p76
      %p78 = scmp.le.s32.totalorder 1, %s18
      %p79 = scmp.lt.s32.totalorder %s18, 3
      %p80 = pnand %p78, %p79
      %p81 = pneg %p80
      // Predicated region
      $region9: #{tpu_custom_call.1} parent=5 // pred_check
        _
      $region10: #{tpu_custom_call.1} parent=5 // pred_check_branch
        %83 = sbr.rel (%p80) target = $region12
      $region11: #{tpu_custom_call.1} parent=5 // pred_region
        %s84 = ssub.s32 %s18, 1
      $region12: #{tpu_custom_call.1} parent=5 // pred_fallthru
        _
      %p85 = scmp.lt.s32.totalorder %s18, 2
      // Predicated region
      $region13: #{tpu_custom_call.1} parent=5 // pred_check
        %p86 = pneg %p85
      $region14: #{tpu_custom_call.1} parent=5 // pred_check_branch
        %88 = sbr.rel (%p86) target = $region16
      $region15: #{tpu_custom_call.1} parent=5 // pred_region
        // Predicated region
        $region17: #{tpu_custom_call.1} parent=15 // pred_check
          %p89 = pneg %p38
        $region18: #{tpu_custom_call.1} parent=15 // pred_check_branch
          %91 = sbr.rel (%p89) target = $region20
        $region19: #{tpu_custom_call.1} parent=15 // pred_region
          #allocation9 [shape = 'u32[6]{0}', space=smem, size = 0x18, scoped, tag = 'DMA stride descriptor']
          %s92 = sand.u32 %s28, 1
          %s93 = scalar_lea.sflag [#allocation5], %s92
          %s94 = sand.u32 %s28, 1
          %s95 = smul.addr %s94, 32
          %s96 = scalar_lea.vmem [#allocation4], %s95
          %s97 = smul.u32 2, %s18
          %s99 = ssub.s32 512, 512
          %100 = vsyncadd %s93, %s99
          %s101 = smul.addr %s97, 128
          %s102 = scalar_lea.hbm %s1, %s101
          %s104 = sshll.u32 1, 14
          %s105 = sxor.u32 4294967295, %s104
          %s107 = sld [smem:[#allocation0]]
          %s108 = sadd.s32 2, %s107
          %s110 = sshll.u32 7, 26
          %s111 = sxor.u32 4294967295, %s110
          %s112 = sand.u32 0, %s111
          %s113 = sshll.u32 %s108, 26
          %s114 = sor.u32 %s112, %s113
          %s115 = sshll.u32 %s96, 4
          %s116 = int_to_ptr.vmem [resolvable:$true] %s115
          %122 = sst [smem:[#allocation9]] 512
          %s123 = scalar_lea.smem [#allocation9], 1
          %124 = sst [smem:[%s123]] 256
          %s125 = scalar_lea.smem [#allocation9], 2
          %126 = sst [smem:[%s125]] 2
          %s127 = scalar_lea.smem [#allocation9], 3
          %128 = sst [smem:[%s127]] 128
          %s129 = scalar_lea.smem [#allocation9], 4
          %130 = sst [smem:[%s129]] 128
          %s131 = scalar_lea.smem [#allocation9], 5
          %132 = sst [smem:[%s131]] 8
          %134 = dma.general %s102, 512, %s116, %s93, 131072, [#allocation9], %s114, 0
        $region20: #{tpu_custom_call.1} parent=15 // pred_fallthru
          _
      $region16: #{tpu_custom_call.1} parent=5 // pred_fallthru
        _
      %p135 = scmp.le.s32.totalorder 1, %s18
      %p136 = scmp.lt.s32.totalorder %s18, 3
      %p137 = pnand %p135, %p136
      %p138 = pneg %p137
      // Predicated region
      $region21: #{tpu_custom_call.1} parent=5 // pred_check
        _
      $region22: #{tpu_custom_call.1} parent=5 // pred_check_branch
        %140 = sbr.rel (%p137) target = $region24
      $region23: #{tpu_custom_call.1} parent=5 // pred_region
        %s141 = ssub.s32 %s18, 1
        %s142 = sand.u32 %s31, 1
        %s143 = scalar_lea.sflag [#allocation5], %s142
        %s144 = sand.u32 %s31, 1
        %s145 = smul.addr %s144, 32
        %s146 = scalar_lea.vmem [#allocation4], %s145
        // Predicated region
        $region25: #{tpu_custom_call.1} parent=23 // pred_check
          %p147 = pneg %p44
        $region26: #{tpu_custom_call.1} parent=23 // pred_check_branch
          %149 = sbr.rel (%p147) target = $region28
        $region27: #{tpu_custom_call.1} parent=23 // pred_region
          %150 = dma.done %s143, 512
        $region28: #{tpu_custom_call.1} parent=23 // pred_fallthru
          _
        %s151 = sand.u32 %s31, 1
        %s152 = scalar_lea.sflag [#allocation5], %s151
        %s153 = sand.u32 %s31, 1
        %s154 = smul.addr %s153, 32
        %s155 = scalar_lea.vmem [#allocation4], %s154
        %p156 = pneg %p44
        %p157 = pneg %p41
        %p158 = pneg %p70
        %p159 = pneg %p67
        %s160 = sand.u32 %s57, 1
        %s161 = scalar_lea.sflag [#allocation6], %s160
        %s162 = sand.u32 %s57, 1
        %s163 = smul.addr %s162, 32
        %s164 = scalar_lea.vmem [#allocation7], %s163
        %s165 = smul.u32 2, %s23
        %s166 = smul.u32 2, %s23
        %s167 = sld [smem:[#allocation3]]
        %s168 = sld [smem:[#allocation3 + $0x1]]
        %s169 = sld [smem:[#allocation3 + $0x2]]
        %s170 = sld [smem:[#allocation3 + $0x3]]
        %s171 = sld [smem:[#allocation3 + $0x4]]
        %s172 = sld [smem:[#allocation3 + $0x5]]
        %s173 = sld [smem:[#allocation3 + $0x6]]
        %s174 = sld [smem:[#allocation3 + $0x7]]
        %s175 = sld [smem:[#allocation3 + $0x8]]
        %s176 = sld [smem:[#allocation3 + $0x9]]
        %s177 = sld [smem:[#allocation3 + $0xa]]
        %s178 = sld [smem:[#allocation3 + $0xb]]
        %s179 = sld [smem:[#allocation3 + $0xc]]
        %s180 = sld [smem:[#allocation3 + $0xd]]
        %s181 = sld [smem:[#allocation3 + $0xe]]
        %s182 = sld [smem:[#allocation3 + $0xf]]
        %s183 = sld [smem:[#allocation3 + $0x10]]
        %s184 = sld [smem:[#allocation3 + $0x11]]
        %s185 = sld [smem:[#allocation3 + $0x12]]
        %s186 = sld [smem:[#allocation3 + $0x13]]
        %s187 = sld [smem:[#allocation3 + $0x14]]
        %s188 = sld [smem:[#allocation3 + $0x15]]
        %s189 = sld [smem:[#allocation3 + $0x16]]
        %s190 = sld [smem:[#allocation3 + $0x17]]
        %s191 = sld [smem:[#allocation3 + $0x18]]
        %s192 = sld [smem:[#allocation3 + $0x19]]
        %s193 = sld [smem:[#allocation3 + $0x1a]]
        %s194 = sld [smem:[#allocation3 + $0x1b]]
        %s195 = sld [smem:[#allocation3 + $0x1c]]
        %s196 = sld [smem:[#allocation3 + $0x1d]]
        %s197 = sld [smem:[#allocation3 + $0x1e]]
        %s198 = sld [smem:[#allocation3 + $0x1f]]
        %s199 = sld [smem:[#allocation3 + $0x20]]
        %s200 = sld [smem:[#allocation3 + $0x21]]
        %s201 = sld [smem:[#allocation3 + $0x22]]
        %s202 = sld [smem:[#allocation3 + $0x23]]
        %s203 = sld [smem:[#allocation3 + $0x24]]
        %s204 = sld [smem:[#allocation3 + $0x25]]
        %s205 = sld [smem:[#allocation3 + $0x26]]
        %s206 = sld [smem:[#allocation3 + $0x27]]
        %s207 = sld [smem:[#allocation3 + $0x28]]
        %s208 = sld [smem:[#allocation3 + $0x29]]
        %s209 = sld [smem:[#allocation3 + $0x2a]]
        %s210 = sld [smem:[#allocation3 + $0x2b]]
        %s211 = sld [smem:[#allocation3 + $0x2c]]
        %s212 = sld [smem:[#allocation3 + $0x2d]]
        %s213 = sld [smem:[#allocation3 + $0x2e]]
        %s214 = sld [smem:[#allocation3 + $0x2f]]
        %v215 = vld [vmem:[%s146] sm:$0xff]
        %s216 = sadd.s32 0, 16
        %s217 = scalar_lea.vmem %s146, %s216 [#allocation4]
        %v218 = vld [vmem:[%s217] sm:$0xff]
        %v219 = vstv %s167
        %v220 = vmul.f32 %v219, %v215
        %v221 = vstv %s168
        %v222 = vmul.f32 %v221, %v218
        %v223 = vadd.f32 %v220, %v222
        %v224 = vstv %s212
        %v225 = vadd.f32 %v223, %v224
        %v226 = vtanh.pop %v225
        %v227 = vstv %s169
        %v228 = vmul.f32 %v227, %v215
        %v229 = vstv %s170
        %v230 = vmul.f32 %v229, %v218
        %v231 = vadd.f32 %v228, %v230
        %v232 = vadd.f32 %v231, %v224
        %v233 = vtanh.pop %v232
        %v234 = vstv %s171
        %v235 = vmul.f32 %v234, %v215
        %v236 = vstv %s172
        %v237 = vmul.f32 %v236, %v218
        %v238 = vadd.f32 %v235, %v237
        %v239 = vadd.f32 %v238, %v224
        %v240 = vtanh.pop %v239
        %v241 = vstv %s173
        %v242 = vmul.f32 %v241, %v215
        %v243 = vstv %s174
        %v244 = vmul.f32 %v243, %v218
        %v245 = vadd.f32 %v242, %v244
        %v246 = vadd.f32 %v245, %v224
        %v247 = vtanh.pop %v246
        %v248 = vstv %s175
        %v249 = vmul.f32 %v248, %v215
        %v250 = vstv %s176
        %v251 = vmul.f32 %v250, %v218
        %v252 = vadd.f32 %v249, %v251
        %v253 = vadd.f32 %v252, %v224
        %v254 = vtanh.pop %v253
        %v255 = vstv %s177
        %v256 = vmul.f32 %v255, %v226
        %v257 = vstv %s178
        %v258 = vmul.f32 %v257, %v233
        %v259 = vadd.f32 %v256, %v258
        %v260 = vstv %s179
        %v261 = vmul.f32 %v260, %v240
        %v262 = vadd.f32 %v259, %v261
        %v263 = vstv %s180
        %v264 = vmul.f32 %v263, %v247
        %v265 = vadd.f32 %v262, %v264
        %v266 = vstv %s181
        %v267 = vmul.f32 %v266, %v254
        %v268 = vadd.f32 %v265, %v267
        %v269 = vstv %s213
        %v270 = vadd.f32 %v268, %v269
        %v271 = vtanh.pop %v270
        %v272 = vstv %s182
        %v273 = vmul.f32 %v272, %v226
        %v274 = vstv %s183
        %v275 = vmul.f32 %v274, %v233
        %v276 = vadd.f32 %v273, %v275
        %v277 = vstv %s184
        %v278 = vmul.f32 %v277, %v240
        %v279 = vadd.f32 %v276, %v278
        %v280 = vstv %s185
        %v281 = vmul.f32 %v280, %v247
        %v282 = vadd.f32 %v279, %v281
        %v283 = vstv %s186
        %v284 = vmul.f32 %v283, %v254
        %v285 = vadd.f32 %v282, %v284
        %v286 = vadd.f32 %v285, %v269
        %v287 = vtanh.pop %v286
        %v288 = vstv %s187
        %v289 = vmul.f32 %v288, %v226
        %v290 = vstv %s188
        %v291 = vmul.f32 %v290, %v233
        %v292 = vadd.f32 %v289, %v291
        %v293 = vstv %s189
        %v294 = vmul.f32 %v293, %v240
        %v295 = vadd.f32 %v292, %v294
        %v296 = vstv %s190
        %v297 = vmul.f32 %v296, %v247
        %v298 = vadd.f32 %v295, %v297
        %v299 = vstv %s191
        %v300 = vmul.f32 %v299, %v254
        %v301 = vadd.f32 %v298, %v300
        %v302 = vadd.f32 %v301, %v269
        %v303 = vtanh.pop %v302
        %v304 = vstv %s192
        %v305 = vmul.f32 %v304, %v226
        %v306 = vstv %s193
        %v307 = vmul.f32 %v306, %v233
        %v308 = vadd.f32 %v305, %v307
        %v309 = vstv %s194
        %v310 = vmul.f32 %v309, %v240
        %v311 = vadd.f32 %v308, %v310
        %v312 = vstv %s195
        %v313 = vmul.f32 %v312, %v247
        %v314 = vadd.f32 %v311, %v313
        %v315 = vstv %s196
        %v316 = vmul.f32 %v315, %v254
        %v317 = vadd.f32 %v314, %v316
        %v318 = vadd.f32 %v317, %v269
        %v319 = vtanh.pop %v318
        %v320 = vstv %s197
        %v321 = vmul.f32 %v320, %v226
        %v322 = vstv %s198
        %v323 = vmul.f32 %v322, %v233
        %v324 = vadd.f32 %v321, %v323
        %v325 = vstv %s199
        %v326 = vmul.f32 %v325, %v240
        %v327 = vadd.f32 %v324, %v326
        %v328 = vstv %s200
        %v329 = vmul.f32 %v328, %v247
        %v330 = vadd.f32 %v327, %v329
        %v331 = vstv %s201
        %v332 = vmul.f32 %v331, %v254
        %v333 = vadd.f32 %v330, %v332
        %v334 = vadd.f32 %v333, %v269
        %v335 = vtanh.pop %v334
        %v336 = vstv %s202
        %v337 = vmul.f32 %v336, %v271
        %v338 = vstv %s203
        %v339 = vmul.f32 %v338, %v287
        %v340 = vadd.f32 %v337, %v339
        %v341 = vstv %s204
        %v342 = vmul.f32 %v341, %v303
        %v343 = vadd.f32 %v340, %v342
        %v344 = vstv %s205
        %v345 = vmul.f32 %v344, %v319
        %v346 = vadd.f32 %v343, %v345
        %v347 = vstv %s206
        %v348 = vmul.f32 %v347, %v335
        %v349 = vadd.f32 %v346, %v348
        %v350 = vstv %s214
        %v351 = vadd.f32 %v349, %v350
        %v352 = vtanh.pop %v351
        %v353 = vstv %s207
        %v354 = vmul.f32 %v353, %v271
        %v355 = vstv %s208
        %v356 = vmul.f32 %v355, %v287
        %v357 = vadd.f32 %v354, %v356
        %v358 = vstv %s209
        %v359 = vmul.f32 %v358, %v303
        %v360 = vadd.f32 %v357, %v359
        %v361 = vstv %s210
        %v362 = vmul.f32 %v361, %v319
        %v363 = vadd.f32 %v360, %v362
        %v364 = vstv %s211
        %v365 = vmul.f32 %v364, %v335
        %v366 = vadd.f32 %v363, %v365
        %v367 = vadd.f32 %v366, %v350
        %v368 = vtanh.pop %v367
        %369 = vst [vmem:[%s164] sm:$0xff] %v352
        %s370 = scalar_lea.vmem %s164, %s216 [#allocation7]
        %371 = vst [vmem:[%s370] sm:$0xff] %v368
        %s372 = scalar_lea.vmem %s146, 8 [#allocation4]
        %v373 = vld [vmem:[%s372] sm:$0xff]
        %s374 = sadd.s32 8, 16
        %s375 = scalar_lea.vmem %s146, %s374 [#allocation4]
        %v376 = vld [vmem:[%s375] sm:$0xff]
        %v377 = vmul.f32 %v219, %v373
        %v378 = vmul.f32 %v221, %v376
        %v379 = vadd.f32 %v377, %v378
        %v380 = vadd.f32 %v379, %v224
        %v381 = vtanh.pop %v380
        %v382 = vmul.f32 %v227, %v373
        %v383 = vmul.f32 %v229, %v376
        %v384 = vadd.f32 %v382, %v383
        %v385 = vadd.f32 %v384, %v224
        %v386 = vtanh.pop %v385
        %v387 = vmul.f32 %v234, %v373
        %v388 = vmul.f32 %v236, %v376
        %v389 = vadd.f32 %v387, %v388
        %v390 = vadd.f32 %v389, %v224
        %v391 = vtanh.pop %v390
        %v392 = vmul.f32 %v241, %v373
        %v393 = vmul.f32 %v243, %v376
        %v394 = vadd.f32 %v392, %v393
        %v395 = vadd.f32 %v394, %v224
        %v396 = vtanh.pop %v395
        %v397 = vmul.f32 %v248, %v373
        %v398 = vmul.f32 %v250, %v376
        %v399 = vadd.f32 %v397, %v398
        %v400 = vadd.f32 %v399, %v224
        %v401 = vtanh.pop %v400
        %v402 = vmul.f32 %v255, %v381
        %v403 = vmul.f32 %v257, %v386
        %v404 = vadd.f32 %v402, %v403
        %v405 = vmul.f32 %v260, %v391
        %v406 = vadd.f32 %v404, %v405
        %v407 = vmul.f32 %v263, %v396
        %v408 = vadd.f32 %v406, %v407
        %v409 = vmul.f32 %v266, %v401
        %v410 = vadd.f32 %v408, %v409
        %v411 = vadd.f32 %v410, %v269
        %v412 = vtanh.pop %v411
        %v413 = vmul.f32 %v272, %v381
        %v414 = vmul.f32 %v274, %v386
        %v415 = vadd.f32 %v413, %v414
        %v416 = vmul.f32 %v277, %v391
        %v417 = vadd.f32 %v415, %v416
        %v418 = vmul.f32 %v280, %v396
        %v419 = vadd.f32 %v417, %v418
        %v420 = vmul.f32 %v283, %v401
        %v421 = vadd.f32 %v419, %v420
        %v422 = vadd.f32 %v421, %v269
        %v423 = vtanh.pop %v422
        %v424 = vmul.f32 %v288, %v381
        %v425 = vmul.f32 %v290, %v386
        %v426 = vadd.f32 %v424, %v425
        %v427 = vmul.f32 %v293, %v391
        %v428 = vadd.f32 %v426, %v427
        %v429 = vmul.f32 %v296, %v396
        %v430 = vadd.f32 %v428, %v429
        %v431 = vmul.f32 %v299, %v401
        %v432 = vadd.f32 %v430, %v431
        %v433 = vadd.f32 %v432, %v269
        %v434 = vtanh.pop %v433
        %v435 = vmul.f32 %v304, %v381
        %v436 = vmul.f32 %v306, %v386
        %v437 = vadd.f32 %v435, %v436
        %v438 = vmul.f32 %v309, %v391
        %v439 = vadd.f32 %v437, %v438
        %v440 = vmul.f32 %v312, %v396
        %v441 = vadd.f32 %v439, %v440
        %v442 = vmul.f32 %v315, %v401
        %v443 = vadd.f32 %v441, %v442
        %v444 = vadd.f32 %v443, %v269
        %v445 = vtanh.pop %v444
        %v446 = vmul.f32 %v320, %v381
        %v447 = vmul.f32 %v322, %v386
        %v448 = vadd.f32 %v446, %v447
        %v449 = vmul.f32 %v325, %v391
        %v450 = vadd.f32 %v448, %v449
        %v451 = vmul.f32 %v328, %v396
        %v452 = vadd.f32 %v450, %v451
        %v453 = vmul.f32 %v331, %v401
        %v454 = vadd.f32 %v452, %v453
        %v455 = vadd.f32 %v454, %v269
        %v456 = vtanh.pop %v455
        %v457 = vmul.f32 %v336, %v412
        %v458 = vmul.f32 %v338, %v423
        %v459 = vadd.f32 %v457, %v458
        %v460 = vmul.f32 %v341, %v434
        %v461 = vadd.f32 %v459, %v460
        %v462 = vmul.f32 %v344, %v445
        %v463 = vadd.f32 %v461, %v462
        %v464 = vmul.f32 %v347, %v456
        %v465 = vadd.f32 %v463, %v464
        %v466 = vadd.f32 %v465, %v350
        %v467 = vtanh.pop %v466
        %v468 = vmul.f32 %v353, %v412
        %v469 = vmul.f32 %v355, %v423
        %v470 = vadd.f32 %v468, %v469
        %v471 = vmul.f32 %v358, %v434
        %v472 = vadd.f32 %v470, %v471
        %v473 = vmul.f32 %v361, %v445
        %v474 = vadd.f32 %v472, %v473
        %v475 = vmul.f32 %v364, %v456
        %v476 = vadd.f32 %v474, %v475
        %v477 = vadd.f32 %v476, %v350
        %v478 = vtanh.pop %v477
        %s479 = scalar_lea.vmem %s164, 8 [#allocation7]
        %480 = vst [vmem:[%s479] sm:$0xff] %v467
        %s481 = scalar_lea.vmem %s164, %s374 [#allocation7]
        %482 = vst [vmem:[%s481] sm:$0xff] %v478
        %s483 = sand.u32 %s57, 1
        %s484 = scalar_lea.sflag [#allocation6], %s483
        %s485 = sand.u32 %s57, 1
        %s486 = smul.addr %s485, 32
        %s487 = scalar_lea.vmem [#allocation7], %s486
        // Predicated region
        $region29: #{tpu_custom_call.1} parent=23 // pred_check
          %p488 = pneg %p67
        $region30: #{tpu_custom_call.1} parent=23 // pred_check_branch
          %490 = sbr.rel (%p488) target = $region32
        $region31: #{tpu_custom_call.1} parent=23 // pred_region
          #allocation11 [shape = 'u32[6]{0}', space=smem, size = 0x18, scoped, tag = 'DMA stride descriptor']
          %s491 = smul.u32 2, %s23
          %s493 = ssub.s32 512, 512
          %494 = vsyncadd %s484, %s493
          %s495 = smul.addr %s491, 128
          %s496 = scalar_lea.hbm %s2, %s495
          %s498 = sshll.u32 1, 14
          %s499 = sxor.u32 4294967295, %s498
          %s502 = sshll.u32 7, 18
          %s503 = sxor.u32 4294967295, %s502
          %s504 = sand.u32 0, %s503
          %s506 = sor.u32 %s504, 0
          %s507 = sshll.u32 %s487, 4
          %s508 = int_to_ptr.vmem [resolvable:$true] %s507
          %514 = sst [smem:[#allocation11]] 256
          %s515 = scalar_lea.smem [#allocation11], 1
          %516 = sst [smem:[%s515]] 512
          %s517 = scalar_lea.smem [#allocation11], 2
          %518 = sst [smem:[%s517]] 2
          %s519 = scalar_lea.smem [#allocation11], 3
          %520 = sst [smem:[%s519]] 128
          %s521 = scalar_lea.smem [#allocation11], 4
          %522 = sst [smem:[%s521]] 128
          %s523 = scalar_lea.smem [#allocation11], 5
          %524 = sst [smem:[%s523]] 8
          %526 = dma.general %s508, 512, %s496, %s484, 131072, [#allocation11], %s506, 0
        $region32: #{tpu_custom_call.1} parent=23 // pred_fallthru
          _
      $region24: #{tpu_custom_call.1} parent=5 // pred_fallthru
        _
      %p527 = scmp.le.s32.totalorder 2, %s18
      // Predicated region
      $region33: #{tpu_custom_call.1} parent=5 // pred_check
        %p528 = pneg %p527
      $region34: #{tpu_custom_call.1} parent=5 // pred_check_branch
        %530 = sbr.rel (%p528) target = $region36
      $region35: #{tpu_custom_call.1} parent=5 // pred_region
        %s531 = ssub.s32 %s18, 2
        // Predicated region
        $region37: #{tpu_custom_call.1} parent=35 // pred_check
          %p532 = pneg %p73
        $region38: #{tpu_custom_call.1} parent=35 // pred_check_branch
          %534 = sbr.rel (%p532) target = $region40
        $region39: #{tpu_custom_call.1} parent=35 // pred_region
          %s535 = sand.u32 %s58, 1
          %s536 = scalar_lea.sflag [#allocation6], %s535
          %s537 = sand.u32 %s58, 1
          %s538 = smul.addr %s537, 32
          %s539 = scalar_lea.vmem [#allocation7], %s538
          %540 = dma.done %s536, 512
        $region40: #{tpu_custom_call.1} parent=35 // pred_fallthru
          _
      $region36: #{tpu_custom_call.1} parent=5 // pred_fallthru
        _
    $region6: #{tpu_custom_call.1} parent=1 // loop_footer
      %s22 = sadd.s32 1, %s18
    $region7: #{tpu_custom_call.1} parent=1 // loop_footer_branch
      %17 = sbr.rel target = $region3
    $region8: #{tpu_custom_call.1} parent=1 // loop_exit
      _
    %541 = vsyncpa [#allocation5], 1
    %s542 = scalar_lea.sflag [#allocation5], 1
    %543 = vsyncpa %s542, 1
    %544 = vsyncpa [#allocation6], 1
    %s545 = scalar_lea.sflag [#allocation6], 1
    %546 = vsyncpa %s545, 1

</llo_original>
